<compile_context>
chip_gen: v5e
topology: v5e:2x2
jax: 0.10.0
libtpu: 0.0.40
codegen_flags: <defaults>
</compile_context>

<pallas_src>
import functools

import jax
import jax.numpy as jnp
import numpy as np
from jax.experimental import pallas as pl
from jax.experimental.pallas import tpu as pltpu


# ----------------------------- shared helpers -----------------------------
def _layer_norm(x, w, b, eps=1e-6):
    mu = jnp.mean(x, axis=-1, keepdims=True)
    var = jnp.mean((x - mu) ** 2, axis=-1, keepdims=True)
    return (x - mu) * jax.lax.rsqrt(var + eps) * w + b


def _full_spec(arr):
    nd = arr.ndim
    return pl.BlockSpec(arr.shape, lambda *_, nd=nd: (0,) * nd)


def _vmem_limit_bytes():
    # 48 MiB is fine on v5e/v6e (128 MiB VMEM) but 75% of v7x's 64 MiB; derive.
    try:
        cap = int(pltpu.get_tpu_info().vmem_capacity_bytes)
        return max(32 * 1024 * 1024, (cap * 5) // 8)
    except Exception:
        return 48 * 1024 * 1024


# --------------------------------- kernels ---------------------------------
def patch_embed_kernel(x_ref, w_ref, add_ref, o_ref):
    # x_ref: (B*S, K) bf16 (row b*S is zeros -> becomes that sample's CLS row)
    # w_ref: (K, D) bf16; add_ref: (B*S, D) f32 carrying cls + pos (+ conv bias).
    tok = jnp.dot(x_ref[...], w_ref[...], preferred_element_type=jnp.float32)
    o_ref[...] = (tok + add_ref[...]).astype(o_ref.dtype)


def film_block_kernel(x_ref, gamma_ref, beta_ref,
                      ln1_w, ln1_b, wqkv_ref, bqkv_ref, wo_ref, bo_ref, ls1_ref,
                      ln2_w, ln2_b, w1_ref, b1_ref, w2_ref, b2_ref, ls2_ref,
                      o_ref, ctx_ref, *, num_heads, head_dim):
    D = num_heads * head_dim
    x = x_ref[0].astype(jnp.float32)                                    # (S, D)

    # ---- attention: LN1 + fused QKV (softmax scale pre-folded into Q cols) ----
    h = _layer_norm(x, ln1_w[...], ln1_b[...]).astype(jnp.bfloat16)
    qkv = (jnp.dot(h, wqkv_ref[...], preferred_element_type=jnp.float32)
           + bqkv_ref[...]).astype(jnp.bfloat16)                        # (S, 3D)

    for hh in range(num_heads):   # static unroll; hd=128 -> lane-aligned slices
        q = qkv[:, hh * head_dim:(hh + 1) * head_dim]
        k = qkv[:, D + hh * head_dim:D + (hh + 1) * head_dim]
        v = qkv[:, 2 * D + hh * head_dim:2 * D + (hh + 1) * head_dim]
        # scores = q @ k^T (NT dot_general, no explicit transpose)
        s = jax.lax.dot_general(q, k, (((1,), (1,)), ((), ())),
                                preferred_element_type=jnp.float32)     # (S, S)
        s = s - jnp.max(s, axis=-1, keepdims=True)
        p = jnp.exp(s)
        p = p * pl.reciprocal(jnp.sum(p, axis=-1, keepdims=True), approx=True)
        ctx = jnp.dot(p.astype(jnp.bfloat16), v,
                      preferred_element_type=jnp.float32)               # (S, hd)
        ctx_ref[:, hh * head_dim:(hh + 1) * head_dim] = ctx.astype(jnp.bfloat16)

    # Single full-K out-projection over the assembled per-head contexts.
    attn = jnp.dot(ctx_ref[...], wo_ref[...],
                   preferred_element_type=jnp.float32) + bo_ref[...]
    y = x + attn * ls1_ref[...]                                         # layer_scale1 + residual
    y = y * (1.0 + gamma_ref[0]) + beta_ref[0]                          # FiLM modulation

    # ---- MLP (no hidden-dim streaming: weights fit VMEM at this size) ----
    h2 = _layer_norm(y, ln2_w[...], ln2_b[...]).astype(jnp.bfloat16)
    a = jnp.dot(h2, w1_ref[...], preferred_element_type=jnp.float32) + b1_ref[...]
    # TODO(synk): HF DINOv2 uses exact (erf) GELU; tanh approximation used here.
    a = jax.nn.gelu(a, approximate=True).astype(jnp.bfloat16)
    m = jnp.dot(a, w2_ref[...], preferred_element_type=jnp.float32) + b2_ref[...]
    o_ref[0] = (y + m * ls2_ref[...]).astype(o_ref.dtype)


def final_ln_kernel(x_ref, w_ref, b_ref, o_ref):
    o_ref[...] = _layer_norm(x_ref[...].astype(jnp.float32), w_ref[...], b_ref[...])


# ------------------------------- wrapper / glue ----------------------------------
def filmed_vision_backbone_forward(pixel_values, language_embeddings, params):
    """pixel_values: (B, C, H, W) NCHW; language_embeddings: (B, seq, llm_dim)."""
    B, C, H, W = pixel_values.shape
    P = params["patch_size"]
    D = params["vit_dim"]
    NH = params["num_heads"]
    hd = D // NH

    vmem_limit = _vmem_limit_bytes()
    cp_nogrid = pltpu.CompilerParams(vmem_limit_bytes=vmem_limit)
    cp_batch = pltpu.CompilerParams(dimension_semantics=("parallel",),
                                    vmem_limit_bytes=vmem_limit)

    # Unfold NCHW -> (B, N, C*P*P); Conv2d(C, D, kernel=P, stride=P) as a matmul.
    x = pixel_values.reshape(B, C, H // P, P, W // P, P)
    x = x.transpose(0, 2, 4, 1, 3, 5).reshape(B, (H // P) * (W // P), C * P * P)
    x = x.astype(jnp.bfloat16)
    N, K = x.shape[1], x.shape[2]
    S = N + 1

    # Fuse CLS token + positional embedding (+ conv bias) into an additive map and
    # prepend a zero row per sample; batch folded into the matmul M dimension.
    addend = jnp.concatenate(
        [params["cls_token"].reshape(1, 1, D) + params["pos_embed"][:, :1, :],
         params["pos_embed"][:, 1:, :] + params["patch_b"][None, :, :]], axis=1)
    addend = jnp.broadcast_to(addend, (B, S, D)).reshape(B * S, D)
    x_pad = jnp.concatenate([jnp.zeros((B, 1, K), jnp.bfloat16), x],
                            axis=1).reshape(B * S, K)

    h = pl.pallas_call(
        patch_embed_kernel,
        out_shape=jax.ShapeDtypeStruct((B * S, D), jnp.bfloat16),
        in_specs=[_full_spec(x_pad), _full_spec(params["patch_w"]), _full_spec(addend)],
        out_specs=pl.BlockSpec((B * S, D), lambda *_: (0, 0)),
        compiler_params=cp_nogrid,
    )(x_pad, params["patch_w"], addend).reshape(B, S, D)

    # FiLM gamma/beta for all blocks in ONE matmul (hoisted out of the kernels).
    lang_avg = jnp.mean(language_embeddings, axis=1).astype(jnp.float32)   # (B, Ld)
    film_w = jnp.concatenate(
        [jnp.concatenate([blk["w_scale"], blk["w_shift"]], axis=1)
         for blk in params["blocks"]], axis=1)                             # (Ld, 2*L*D)
    film_b = jnp.concatenate(
        [jnp.concatenate([blk["b_scale"], blk["b_shift"]], axis=1)
         for blk in params["blocks"]], axis=1)                             # (1, 2*L*D)
    gb = lang_avg @ film_w + film_b                                        # (B, 2*L*D)

    scale = 1.0 / float(hd) ** 0.5
    for li, blk in enumerate(params["blocks"]):
        gamma = gb[:, (2 * li) * D:(2 * li + 1) * D].reshape(B, 1, D)
        beta = gb[:, (2 * li + 1) * D:(2 * li + 2) * D].reshape(B, 1, D)

        # Fuse wq/wk/wv into one (D, 3D) weight; fold 1/sqrt(hd) into the Q part.
        wqkv = jnp.concatenate(
            [(blk["wq"].astype(jnp.float32) * scale).astype(jnp.bfloat16),
             blk["wk"], blk["wv"]], axis=1)                                # (D, 3D)
        bqkv = jnp.concatenate([blk["bq"] * scale, blk["bk"], blk["bv"]], axis=1)

        h = pl.pallas_call(
            functools.partial(film_block_kernel, num_heads=NH, head_dim=hd),
            out_shape=jax.ShapeDtypeStruct((B, S, D), jnp.bfloat16),
            grid=(B,),
            in_specs=[pl.BlockSpec((1, S, D), lambda b: (b, 0, 0)),
                      pl.BlockSpec((1, 1, D), lambda b: (b, 0, 0)),
                      pl.BlockSpec((1, 1, D), lambda b: (b, 0, 0)),
                      _full_spec(blk["ln1_w"]), _full_spec(blk["ln1_b"]),
                      _full_spec(wqkv), _full_spec(bqkv),
                      _full_spec(blk["wo"]), _full_spec(blk["bo"]),
                      _full_spec(blk["ls1"]),
                      _full_spec(blk["ln2_w"]), _full_spec(blk["ln2_b"]),
                      _full_spec(blk["w_fc1"]), _full_spec(blk["b_fc1"]),
                      _full_spec(blk["w_fc2"]), _full_spec(blk["b_fc2"]),
                      _full_spec(blk["ls2"])],
            out_specs=pl.BlockSpec((1, S, D), lambda b: (b, 0, 0)),
            scratch_shapes=[pltpu.VMEM((S, D), jnp.bfloat16)],
            compiler_params=cp_batch,
        )(h, gamma, beta,
          blk["ln1_w"], blk["ln1_b"], wqkv, bqkv, blk["wo"], blk["bo"], blk["ls1"],
          blk["ln2_w"], blk["ln2_b"], blk["w_fc1"], blk["b_fc1"],
          blk["w_fc2"], blk["b_fc2"], blk["ls2"])

    # Final LayerNorm: fold batch into the row dimension, one lane-dense call.
    h_flat = h.reshape(B * S, D)
    out = pl.pallas_call(
        final_ln_kernel,
        out_shape=jax.ShapeDtypeStruct((B * S, D), jnp.float32),
        in_specs=[pl.BlockSpec((B * S, D), lambda *_: (0, 0)),
                  _full_spec(params["final_ln_w"]),
                  _full_spec(params["final_ln_b"])],
        out_specs=pl.BlockSpec((B * S, D), lambda *_: (0, 0)),
        compiler_params=cp_nogrid,
    )(h_flat, params["final_ln_w"], params["final_ln_b"]).reshape(B, S, D)
    return out


# -------------------------- deterministic parameter init --------------------------
def init_params(key, *, C=3, patch=8, img=32, vit_dim=256, llm_dim=64,
                num_heads=2, mlp_dim=512, num_layers=2):
    assert vit_dim % num_heads == 0
    N = (img // patch) ** 2
    S = N + 1
    K = C * patch * patch
    keys = jax.random.split(key, 4 + num_layers)

    def nrm(k, shape, dtype=jnp.float32, scale=0.02):
        return (scale * jax.random.normal(k, shape)).astype(dtype)

    bf = jnp.bfloat16
    params = {
        "patch_size": patch, "vit_dim": vit_dim, "num_heads": num_heads,
        "patch_w": nrm(keys[0], (K, vit_dim), bf),
        "patch_b": nrm(keys[1], (1, vit_dim)),
        "cls_token": nrm(keys[2], (1, 1, vit_dim)),
        "pos_embed": nrm(keys[3], (1, S, vit_dim)),
        "final_ln_w": jnp.ones((1, vit_dim), jnp.float32),
        "final_ln_b": jnp.zeros((1, vit_dim), jnp.float32),
        "blocks": [],
    }
    D, M, Ld = vit_dim, mlp_dim, llm_dim
    for li in range(num_layers):
        ks = jax.random.split(keys[4 + li], 16)
        blk = {
            "ln1_w": jnp.ones((1, D), jnp.float32), "ln1_b": jnp.zeros((1, D), jnp.float32),
            "wq": nrm(ks[0], (D, D), bf), "bq": nrm(ks[1], (1, D)),
            "wk": nrm(ks[2], (D, D), bf), "bk": nrm(ks[3], (1, D)),
            "wv": nrm(ks[4], (D, D), bf), "bv": nrm(ks[5], (1, D)),
            "wo": nrm(ks[6], (D, D), bf), "bo": nrm(ks[7], (1, D)),
            "ls1": jnp.full((1, D), 0.1, jnp.float32),
            # nn.Linear(llm_dim, vit_dim), stored pre-transposed (Ld, D); consumed
            # by the hoisted FiLM matmul in the wrapper, so kept in f32.
            "w_scale": nrm(ks[8], (Ld, D)), "b_scale": nrm(ks[9], (1, D)),
            "w_shift": nrm(ks[10], (Ld, D)), "b_shift": nrm(ks[11], (1, D)),
            "ln2_w": jnp.ones((1, D), jnp.float32), "ln2_b": jnp.zeros((1, D), jnp.float32),
            "w_fc1": nrm(ks[12], (D, M), bf), "b_fc1": nrm(ks[13], (1, M)),
            "w_fc2": nrm(ks[14], (M, D), bf), "b_fc2": nrm(ks[15], (1, D)),
            "ls2": jnp.full((1, D), 0.1, jnp.float32),
        }
        params["blocks"].append(blk)
    return params


# ----------------------------- pure-JAX reference --------------------------------
def _ref_block(x, lang, blk, num_heads):
    B, S, D = x.shape
    hd = D // num_heads
    f32 = jnp.float32
    gamma = lang @ blk["w_scale"] + blk["b_scale"]                   # (B, D)
    beta = lang @ blk["w_shift"] + blk["b_shift"]
    h = _layer_norm(x, blk["ln1_w"], blk["ln1_b"])
    q = h @ blk["wq"].astype(f32) + blk["bq"]
    k = h @ blk["wk"].astype(f32) + blk["bk"]
    v = h @ blk["wv"].astype(f32) + blk["bv"]
    q = q.reshape(B, S, num_heads, hd).transpose(0, 2, 1, 3)
    k = k.reshape(B, S, num_heads, hd).transpose(0, 2, 1, 3)
    v = v.reshape(B, S, num_heads, hd).transpose(0, 2, 1, 3)
    s = jnp.einsum("bhqd,bhkd->bhqk", q, k) / float(hd) ** 0.5
    p = jax.nn.softmax(s, axis=-1)
    ctx = jnp.einsum("bhqk,bhkd->bhqd", p, v).transpose(0, 2, 1, 3).reshape(B, S, D)
    attn_out = (ctx @ blk["wo"].astype(f32) + blk["bo"]) * blk["ls1"]
    x = x + attn_out
    x = x * (1.0 + gamma[:, None, :]) + beta[:, None, :]
    h2 = _layer_norm(x, blk["ln2_w"], blk["ln2_b"])
    m = jax.nn.gelu(h2 @ blk["w_fc1"].astype(f32) + blk["b_fc1"], approximate=True)
    m = (m @ blk["w_fc2"].astype(f32) + blk["b_fc2"]) * blk["ls2"]
    return x + m


def reference_forward(pixel_values, language_embeddings, params):
    B, C, H, W = pixel_values.shape
    P, D = params["patch_size"], params["vit_dim"]
    x = pixel_values.reshape(B, C, H // P, P, W // P, P)
    x = x.transpose(0, 2, 4, 1, 3, 5).reshape(B, (H // P) * (W // P), C * P * P)
    tokens = x @ params["patch_w"].astype(jnp.float32) + params["patch_b"]
    cls = jnp.broadcast_to(params["cls_token"], (B, 1, D))
    h = jnp.concatenate([cls, tokens], axis=1) + params["pos_embed"]
    lang_avg = jnp.mean(language_embeddings, axis=1)
    for blk in params["blocks"]:
        h = _ref_block(h, lang_avg, blk, params["num_heads"])
    return _layer_norm(h, params["final_ln_w"], params["final_ln_b"])


# ------------------------------------ main ----------------------------------------
if __name__ == "__main__":
    key = jax.random.PRNGKey(0)
    k_px, k_lang, k_param = jax.random.split(key, 3)

    B, C, Himg, Wimg = 2, 3, 32, 32          # patch=8 -> 16 patches (+CLS) = 17 tokens
    lang_seq, llm_dim = 6, 64
    pixel_values = jax.random.normal(k_px, (B, C, Himg, Wimg), jnp.float32)
    language_embeddings = jax.random.normal(k_lang, (B, lang_seq, llm_dim), jnp.float32)

    params = init_params(k_param, C=C, patch=8, img=Himg, vit_dim=256, llm_dim=llm_dim,
                         num_heads=2, mlp_dim=512, num_layers=2)

    out = filmed_vision_backbone_forward(pixel_values, language_embeddings, params)
    out = jax.block_until_ready(out)

    ref = reference_forward(pixel_values, language_embeddings, params)
    assert out.shape == ref.shape == (B, 17, 256)
    out_np = np.asarray(out, dtype=np.float32)
    ref_np = np.asarray(ref, dtype=np.float32)
    max_err = float(np.max(np.abs(out_np - ref_np)))
    assert np.allclose(out_np, ref_np, rtol=5e-2, atol=5e-2), max_err

    print("KERNEL_OK")
</pallas_src>

<mosaic_0001>
module attributes {stable_mosaic.version = 11 : i64} {
  func.func @patch_embed_kernel(%arg0: memref<34x192xbf16, #tpu.memory_space<vmem>>, %arg1: memref<192x256xbf16, #tpu.memory_space<vmem>>, %arg2: memref<34x256xf32, #tpu.memory_space<vmem>>, %arg3: memref<34x256xbf16, #tpu.memory_space<vmem>>) attributes {dimension_semantics = [], scalar_prefetch = 0 : i64, scratch_operands = 0 : i64, tpu.core_type = #tpu.core_type<tc>} {
    %c0 = arith.constant 0 : index
    %c0_0 = arith.constant 0 : index
    %0 = vector.load %arg0[%c0, %c0_0] : memref<34x192xbf16, #tpu.memory_space<vmem>>, vector<34x192xbf16>
    %c0_1 = arith.constant 0 : index
    %c0_2 = arith.constant 0 : index
    %1 = vector.load %arg1[%c0_1, %c0_2] : memref<192x256xbf16, #tpu.memory_space<vmem>>, vector<192x256xbf16>
    %cst = arith.constant dense<0.000000e+00> : vector<34x256xf32>
    %2 = tpu.matmul %0, %1, %cst {dimension_numbers = #tpu.dot_dimension_numbers<[1], [0], [0], [1], [0, 0, 1, 1], [], []>} : vector<34x192xbf16>, vector<192x256xbf16>, vector<34x256xf32> -> vector<34x256xf32>
    %c0_3 = arith.constant 0 : index
    %c0_4 = arith.constant 0 : index
    %3 = vector.load %arg2[%c0_3, %c0_4] : memref<34x256xf32, #tpu.memory_space<vmem>>, vector<34x256xf32>
    %4 = arith.addf %2, %3 : vector<34x256xf32>
    %5 = arith.truncf %4 : vector<34x256xf32> to vector<34x256xbf16>
    %c0_5 = arith.constant 0 : index
    %c0_6 = arith.constant 0 : index
    %6 = vector.load %arg3[%c0_5, %c0_6] : memref<34x256xbf16, #tpu.memory_space<vmem>>, vector<34x256xbf16>
    tpu.vector_store %arg3[%c0_5, %c0_6], %5 {strides = array<i32>} : memref<34x256xbf16, #tpu.memory_space<vmem>>, vector<34x256xbf16>,
    return
  }
}

</mosaic_0001>

<llo_original>
// kernel: tpu_custom_call.1
$region0: #{tpu_custom_call.1}
  #allocation0 [shape = 'u32[]', space=smem, size = 0x4, offset = 0x4, fixed_abs, tag = 'smem constant byte address 0x4 - core index']
  #allocation1 [shape = 'u32[72,128]{1,0:T(1,128)}', space=vmem, size = 0x9000, scoped, tag = 'internal scratch']
  %s0 = inlined_call_operand.hbm [shape: bf16[34,192], index: 0, kind: input, shape index: {}]
  %s1 = inlined_call_operand.hbm [shape: bf16[192,256], index: 1, kind: input, shape index: {}]
  %s2 = inlined_call_operand.hbm [shape: f32[34,256], index: 2, kind: input, shape index: {}]
  %s3 = inlined_call_operand.hbm [shape: bf16[34,256], index: 3, kind: output, shape index: {}]
  %s4 = sld [smem:[#allocation0]]
  $region34: #{tpu_custom_call.1} parent=0
    _
  %s6 = ssub.s32 1, %s4
  %s7 = scalar_select 0, %s6, %s4
  $region1: #{tpu_custom_call.1} parent=0
    #allocation2 [shape = 'u8[20480]{0}', space=vmem, size = 0x5000, scoped, tag = 'input window, operand 0, single buffered']
    #allocation3 [shape = 's32[1]{0}', space=sflag, size = 0x4, scoped, tag = 'scoped memory for tpu_custom_call.1']
    #allocation4 [shape = 's32[1]{0}', space=sflag, size = 0x4, scoped, tag = 'scoped memory for tpu_custom_call.1']
    #allocation5 [shape = 'u8[98304]{0}', space=vmem, size = 0x18000, scoped, tag = 'input window, operand 1, single buffered']
    #allocation6 [shape = 's32[1]{0}', space=sflag, size = 0x4, scoped, tag = 'scoped memory for tpu_custom_call.1']
    #allocation7 [shape = 'u8[40960]{0}', space=vmem, size = 0xa000, scoped, tag = 'input window, operand 2, single buffered']
    #allocation8 [shape = 'u8[20480]{0}', space=vmem, size = 0x5000, scoped, tag = 'output window, operand 0, single buffered']
    %8 = vsyncpa [#allocation3], 0
    %9 = vsyncpa [#allocation6], 0
    %10 = vsyncpa [#allocation4], 0
    // Predicated region
    $region2: #{tpu_custom_call.1} parent=1 // pred_check
      _
    $region3: #{tpu_custom_call.1} parent=1 // pred_check_branch
      %12 = sbr.rel (0) target = $region5
    $region4: #{tpu_custom_call.1} parent=1 // pred_region
      %14 = vsyncadd [#allocation3], 0
      %s15 = sshll.u32 %s0, 4
      %s16 = int_to_ptr.hbm [resolvable:$true] %s15
      %s17 = sshll.u32 [#allocation2], 4
      %s18 = int_to_ptr.vmem [resolvable:$true] %s17
      %23 = dma.hbm_to_vmem [thread:$0]  %s16, 640, %s18, [#allocation3], 128, 128, 8
    $region5: #{tpu_custom_call.1} parent=1 // pred_fallthru
      _
    // Predicated region
    $region6: #{tpu_custom_call.1} parent=1 // pred_check
      _
    $region7: #{tpu_custom_call.1} parent=1 // pred_check_branch
      %25 = sbr.rel (0) target = $region9
    $region8: #{tpu_custom_call.1} parent=1 // pred_region
      %27 = vsyncadd [#allocation6], 0
      %s28 = sshll.u32 %s1, 4
      %s29 = int_to_ptr.hbm [resolvable:$true] %s28
      %s30 = sshll.u32 [#allocation5], 4
      %s31 = int_to_ptr.vmem [resolvable:$true] %s30
      %36 = dma.hbm_to_vmem [thread:$0]  %s29, 3072, %s31, [#allocation6], 128, 128, 8
    $region9: #{tpu_custom_call.1} parent=1 // pred_fallthru
      _
    // Predicated region
    $region10: #{tpu_custom_call.1} parent=1 // pred_check
      _
    $region11: #{tpu_custom_call.1} parent=1 // pred_check_branch
      %38 = sbr.rel (0) target = $region13
    $region12: #{tpu_custom_call.1} parent=1 // pred_region
      %40 = vsyncadd [#allocation6], 0
      %s41 = sshll.u32 %s2, 4
      %s42 = int_to_ptr.hbm [resolvable:$true] %s41
      %s43 = sshll.u32 [#allocation7], 4
      %s44 = int_to_ptr.vmem [resolvable:$true] %s43
      %49 = dma.hbm_to_vmem [thread:$0]  %s42, 1280, %s44, [#allocation6], 256, 256, 16
    $region13: #{tpu_custom_call.1} parent=1 // pred_fallthru
      _
    // Predicated region
    $region14: #{tpu_custom_call.1} parent=1 // pred_check
      _
    $region15: #{tpu_custom_call.1} parent=1 // pred_check_branch
      %51 = sbr.rel (0) target = $region17
    $region16: #{tpu_custom_call.1} parent=1 // pred_region
      %53 = dma.done [#allocation3], 640
    $region17: #{tpu_custom_call.1} parent=1 // pred_fallthru
      _
    // Predicated region
    $region18: #{tpu_custom_call.1} parent=1 // pred_check
      _
    $region19: #{tpu_custom_call.1} parent=1 // pred_check_branch
      %55 = sbr.rel (0) target = $region21
    $region20: #{tpu_custom_call.1} parent=1 // pred_region
      %57 = dma.done [#allocation6], 3072
    $region21: #{tpu_custom_call.1} parent=1 // pred_fallthru
      _
    // Predicated region
    $region22: #{tpu_custom_call.1} parent=1 // pred_check
      _
    $region23: #{tpu_custom_call.1} parent=1 // pred_check_branch
      %59 = sbr.rel (0) target = $region25
    $region24: #{tpu_custom_call.1} parent=1 // pred_region
      %61 = dma.done [#allocation6], 1280
    $region25: #{tpu_custom_call.1} parent=1 // pred_fallthru
      _
    %v63 = vld [vmem:[#allocation2] sm:$0xff]
    %v64 = vld [vmem:[#allocation2 + $0x8] sm:$0xff]
    %v65 = vld [vmem:[#allocation2 + $0x10] sm:$0xff]
    %v66 = vld [vmem:[#allocation2 + $0x18] sm:$0xff]
    %v67 = vld [vmem:[#allocation2 + $0x20] sm:$0x11]
    %v68 = vld [vmem:[#allocation5] sm:$0xff]
    %v69 = vld [vmem:[#allocation5 + $0x8] sm:$0xff]
    %v70 = vld [vmem:[#allocation5 + $0x10] sm:$0xff]
    %v71 = vld [vmem:[#allocation5 + $0x18] sm:$0xff]
    %v72 = vld [vmem:[#allocation5 + $0x20] sm:$0xff]
    %v73 = vld [vmem:[#allocation5 + $0x28] sm:$0xff]
    %v74 = vld [vmem:[#allocation5 + $0x30] sm:$0xff]
    %v75 = vld [vmem:[#allocation5 + $0x38] sm:$0xff]
    %v76 = vld [vmem:[#allocation5 + $0x40] sm:$0xff]
    %v77 = vld [vmem:[#allocation5 + $0x48] sm:$0xff]
    %v78 = vld [vmem:[#allocation5 + $0x50] sm:$0xff]
    %v79 = vld [vmem:[#allocation5 + $0x58] sm:$0xff]
    %v80 = vld [vmem:[#allocation5 + $0x60] sm:$0xff]
    %v81 = vld [vmem:[#allocation5 + $0x68] sm:$0xff]
    %v82 = vld [vmem:[#allocation5 + $0x70] sm:$0xff]
    %v83 = vld [vmem:[#allocation5 + $0x78] sm:$0xff]
    %v84 = vld [vmem:[#allocation5 + $0x80] sm:$0xff]
    %v85 = vld [vmem:[#allocation5 + $0x88] sm:$0xff]
    %v86 = vld [vmem:[#allocation5 + $0x90] sm:$0xff]
    %v87 = vld [vmem:[#allocation5 + $0x98] sm:$0xff]
    %v88 = vld [vmem:[#allocation5 + $0xa0] sm:$0xff]
    %v89 = vld [vmem:[#allocation5 + $0xa8] sm:$0xff]
    %v90 = vld [vmem:[#allocation5 + $0xb0] sm:$0xff]
    %v91 = vld [vmem:[#allocation5 + $0xb8] sm:$0xff]
    %v92 = vld [vmem:[#allocation7] sm:$0xff]
    %v93 = vld [vmem:[#allocation7 + $0x8] sm:$0xff]
    %v94 = vld [vmem:[#allocation7 + $0x10] sm:$0xff]
    %v95 = vld [vmem:[#allocation7 + $0x18] sm:$0xff]
    %v96 = vld [vmem:[#allocation7 + $0x20] sm:$0xff]
    %v97 = vld [vmem:[#allocation7 + $0x28] sm:$0xff]
    %v98 = vld [vmem:[#allocation7 + $0x30] sm:$0xff]
    %v99 = vld [vmem:[#allocation7 + $0x38] sm:$0xff]
    %v100 = vld [vmem:[#allocation7 + $0x40] sm:$0x3]
    %v101 = vld [vmem:[#allocation7 + $0x48] sm:$0x3]
    %v107 = vunpack.c.l.b16 %v63
    %v108 = vunpack.c.h.b16 %v63
    %v109 = vunpack.c.l.b16 %v64
    %v110 = vunpack.c.h.b16 %v64
    %v111 = vunpack.c.l.b16 %v65
    %v112 = vunpack.c.h.b16 %v65
    %v113 = vunpack.c.l.b16 %v66
    %v114 = vunpack.c.h.b16 %v66
    %v115 = vunpack.c.l.b16 %v67
    %v116 = vunpack.c.h.b16 %v67
    %v117 = vpack.c.b16 %v109, %v107
    %v118 = vpack.c.b16 %v110, %v108
    %v119 = vpack.c.b16 %v113, %v111
    %v120 = vpack.c.b16 %v114, %v112
    %v121 = vpack.c.b16 %v115, %v115
    %v122 = vpack.c.b16 %v116, %v116
    %v150 = vunpack.c.l.b16 %v68
    %v151 = vunpack.c.h.b16 %v68
    %v152 = vunpack.c.l.b16 %v69
    %v153 = vunpack.c.h.b16 %v69
    %v154 = vunpack.c.l.b16 %v70
    %v155 = vunpack.c.h.b16 %v70
    %v156 = vunpack.c.l.b16 %v71
    %v157 = vunpack.c.h.b16 %v71
    %v158 = vunpack.c.l.b16 %v72
    %v159 = vunpack.c.h.b16 %v72
    %v160 = vunpack.c.l.b16 %v73
    %v161 = vunpack.c.h.b16 %v73
    %v162 = vunpack.c.l.b16 %v74
    %v163 = vunpack.c.h.b16 %v74
    %v164 = vunpack.c.l.b16 %v75
    %v165 = vunpack.c.h.b16 %v75
    %v166 = vunpack.c.l.b16 %v76
    %v167 = vunpack.c.h.b16 %v76
    %v168 = vunpack.c.l.b16 %v77
    %v169 = vunpack.c.h.b16 %v77
    %v170 = vunpack.c.l.b16 %v78
    %v171 = vunpack.c.h.b16 %v78
    %v172 = vunpack.c.l.b16 %v79
    %v173 = vunpack.c.h.b16 %v79
    %v174 = vunpack.c.l.b16 %v80
    %v175 = vunpack.c.h.b16 %v80
    %v176 = vunpack.c.l.b16 %v81
    %v177 = vunpack.c.h.b16 %v81
    %v178 = vunpack.c.l.b16 %v82
    %v179 = vunpack.c.h.b16 %v82
    %v180 = vunpack.c.l.b16 %v83
    %v181 = vunpack.c.h.b16 %v83
    %v182 = vunpack.c.l.b16 %v84
    %v183 = vunpack.c.h.b16 %v84
    %v184 = vunpack.c.l.b16 %v85
    %v185 = vunpack.c.h.b16 %v85
    %v186 = vunpack.c.l.b16 %v86
    %v187 = vunpack.c.h.b16 %v86
    %v188 = vunpack.c.l.b16 %v87
    %v189 = vunpack.c.h.b16 %v87
    %v190 = vunpack.c.l.b16 %v88
    %v191 = vunpack.c.h.b16 %v88
    %v192 = vunpack.c.l.b16 %v89
    %v193 = vunpack.c.h.b16 %v89
    %v194 = vunpack.c.l.b16 %v90
    %v195 = vunpack.c.h.b16 %v90
    %v196 = vunpack.c.l.b16 %v91
    %v197 = vunpack.c.h.b16 %v91
    %v198 = vpack.c.b16 %v152, %v150
    %v199 = vpack.c.b16 %v153, %v151
    %v200 = vpack.c.b16 %v156, %v154
    %v201 = vpack.c.b16 %v157, %v155
    %v202 = vpack.c.b16 %v160, %v158
    %v203 = vpack.c.b16 %v161, %v159
    %v204 = vpack.c.b16 %v164, %v162
    %v205 = vpack.c.b16 %v165, %v163
    %v206 = vpack.c.b16 %v168, %v166
    %v207 = vpack.c.b16 %v169, %v167
    %v208 = vpack.c.b16 %v172, %v170
    %v209 = vpack.c.b16 %v173, %v171
    %v210 = vpack.c.b16 %v176, %v174
    %v211 = vpack.c.b16 %v177, %v175
    %v212 = vpack.c.b16 %v180, %v178
    %v213 = vpack.c.b16 %v181, %v179
    %v214 = vpack.c.b16 %v184, %v182
    %v215 = vpack.c.b16 %v185, %v183
    %v216 = vpack.c.b16 %v188, %v186
    %v217 = vpack.c.b16 %v189, %v187
    %v218 = vpack.c.b16 %v192, %v190
    %v219 = vpack.c.b16 %v193, %v191
    %v220 = vpack.c.b16 %v196, %v194
    %v221 = vpack.c.b16 %v197, %v195
    %vm246 = vcmask 523264
    %v248 = vsel %vm246, %v118, 0
    %v251 = vsel %vm246, %v120, 0
    %v254 = vsel %vm246, %v122, 0
    %256 = vmatpush.bf16.msra.mxu0 %v212
    %257 = vmatpush.bf16.msra.mxu0 %v210
    %258 = vmatpush.bf16.msra.mxu0 %v208
    %259 = vmatpush.bf16.msra.mxu0 %v206
    %260 = vmatpush.bf16.msra.mxu0 %v204
    %261 = vmatpush.bf16.msra.mxu0 %v202
    %262 = vmatpush.bf16.msra.mxu0 %v200
    %263 = vmatpush.bf16.msra.mxu0 %v198
    %264 = vmatmul.bf16.gmra.mxu0 %v117
    %v265 = vpop.f32.mrf.mxu0
    %v266 = vadd.f32 %v92, %v265
    %v267 = vpop.f32.mrf.mxu0
    %v268 = vadd.f32 %v94, %v267
    %269 = vmatmul.bf16.gmra.mxu0 %v119
    %v270 = vpop.f32.mrf.mxu0
    %v271 = vadd.f32 %v96, %v270
    %v272 = vpop.f32.mrf.mxu0
    %v273 = vadd.f32 %v98, %v272
    %274 = vmatmul.bf16.gmra.mxu0 %v121
    %v275 = vpop.f32.mrf.mxu0
    %v276 = vadd.f32 %v100, %v275
    %v277 = vpop.f32.mrf.mxu0
    %278 = vdwg.mxu0
    %279 = vmatpush.bf16.msra.mxu0 0
    %280 = vmatpush.bf16.msra.mxu0 0
    %281 = vmatpush.bf16.msra.mxu0 0
    %282 = vmatpush.bf16.msra.mxu0 0
    %283 = vmatpush.bf16.msra.mxu0 %v220
    %284 = vmatpush.bf16.msra.mxu0 %v218
    %285 = vmatpush.bf16.msra.mxu0 %v216
    %286 = vmatpush.bf16.msra.mxu0 %v214
    %287 = vmatmul.bf16.gmra.mxu0 %v248
    %v288 = vpop.f32.mrf.mxu0
    %v289 = vadd.f32 %v266, %v288
    %v290 = vpop.f32.mrf.mxu0
    %v291 = vadd.f32 %v268, %v290
    %292 = vmatmul.bf16.gmra.mxu0 %v251
    %v293 = vpop.f32.mrf.mxu0
    %v294 = vadd.f32 %v271, %v293
    %v295 = vpop.f32.mrf.mxu0
    %v296 = vadd.f32 %v273, %v295
    %297 = vmatmul.bf16.gmra.mxu0 %v254
    %v298 = vpop.f32.mrf.mxu0
    %v299 = vadd.f32 %v276, %v298
    %v300 = vpop.f32.mrf.mxu0
    %301 = vdwg.mxu0
    %302 = vmatpush.bf16.msra.mxu0 %v213
    %303 = vmatpush.bf16.msra.mxu0 %v211
    %304 = vmatpush.bf16.msra.mxu0 %v209
    %305 = vmatpush.bf16.msra.mxu0 %v207
    %306 = vmatpush.bf16.msra.mxu0 %v205
    %307 = vmatpush.bf16.msra.mxu0 %v203
    %308 = vmatpush.bf16.msra.mxu0 %v201
    %309 = vmatpush.bf16.msra.mxu0 %v199
    %310 = vmatmul.bf16.gmra.mxu0 %v117
    %v311 = vpop.f32.mrf.mxu0
    %v312 = vadd.f32 %v93, %v311
    %v313 = vpop.f32.mrf.mxu0
    %v314 = vadd.f32 %v95, %v313
    %315 = vmatmul.bf16.gmra.mxu0 %v119
    %v316 = vpop.f32.mrf.mxu0
    %v317 = vadd.f32 %v97, %v316
    %v318 = vpop.f32.mrf.mxu0
    %v319 = vadd.f32 %v99, %v318
    %320 = vmatmul.bf16.gmra.mxu0 %v121
    %v321 = vpop.f32.mrf.mxu0
    %v322 = vadd.f32 %v101, %v321
    %v323 = vpop.f32.mrf.mxu0
    %324 = vdwg.mxu0
    %325 = vmatpush.bf16.msra.mxu0 0
    %326 = vmatpush.bf16.msra.mxu0 0
    %327 = vmatpush.bf16.msra.mxu0 0
    %328 = vmatpush.bf16.msra.mxu0 0
    %329 = vmatpush.bf16.msra.mxu0 %v221
    %330 = vmatpush.bf16.msra.mxu0 %v219
    %331 = vmatpush.bf16.msra.mxu0 %v217
    %332 = vmatpush.bf16.msra.mxu0 %v215
    %333 = vmatmul.bf16.gmra.mxu0 %v248
    %v334 = vpop.f32.mrf.mxu0
    %v335 = vadd.f32 %v312, %v334
    %v336 = vpop.f32.mrf.mxu0
    %v337 = vadd.f32 %v314, %v336
    %338 = vmatmul.bf16.gmra.mxu0 %v251
    %v339 = vpop.f32.mrf.mxu0
    %v340 = vadd.f32 %v317, %v339
    %v341 = vpop.f32.mrf.mxu0
    %v342 = vadd.f32 %v319, %v341
    %343 = vmatmul.bf16.gmra.mxu0 %v254
    %v344 = vpop.f32.mrf.mxu0
    %v345 = vadd.f32 %v322, %v344
    %v346 = vpop.f32.mrf.mxu0
    %347 = vdwg.mxu0
    %v348 = vpack.c.bf16 %v335, %v289
    %v349 = vpack.c.bf16 %v337, %v291
    %v350 = vpack.c.bf16 %v340, %v294
    %v351 = vpack.c.bf16 %v342, %v296
    %v352 = vpack.c.bf16 %v345, %v299
    %353 = vst [vmem:[#allocation8] sm:$0xff] %v348
    %354 = vst [vmem:[#allocation8 + $0x8] sm:$0xff] %v349
    %355 = vst [vmem:[#allocation8 + $0x10] sm:$0xff] %v350
    %356 = vst [vmem:[#allocation8 + $0x18] sm:$0xff] %v351
    %357 = vst [vmem:[#allocation8 + $0x20] sm:$0x11] %v352
    // Predicated region
    $region26: #{tpu_custom_call.1} parent=1 // pred_check
      _
    $region27: #{tpu_custom_call.1} parent=1 // pred_check_branch
      %359 = sbr.rel (0) target = $region29
    $region28: #{tpu_custom_call.1} parent=1 // pred_region
      %361 = vsyncadd [#allocation4], 0
      %s362 = sshll.u32 [#allocation8], 4
      %s363 = int_to_ptr.vmem [resolvable:$true] %s362
      %s364 = sshll.u32 %s3, 4
      %s365 = int_to_ptr.hbm [resolvable:$true] %s364
      %370 = dma.vmem_to_hbm [thread:$0]  %s363, 640, %s365, [#allocation4], 128, 128, 8
    $region29: #{tpu_custom_call.1} parent=1 // pred_fallthru
      _
    // Predicated region
    $region30: #{tpu_custom_call.1} parent=1 // pred_check
      _
    $region31: #{tpu_custom_call.1} parent=1 // pred_check_branch
      %372 = sbr.rel (0) target = $region33
    $region32: #{tpu_custom_call.1} parent=1 // pred_region
      %374 = dma.done [#allocation4], 640
    $region33: #{tpu_custom_call.1} parent=1 // pred_fallthru
      _
    %375 = vsyncpa [#allocation3], 1
    %376 = vsyncpa [#allocation6], 1
    %377 = vsyncpa [#allocation4], 1

</llo_original>
